<compile_context>
chip_gen: v7x
topology: tpu7x:2x2x1
jax: 0.10.0
libtpu: 0.0.40
codegen_flags: <defaults>
</compile_context>

<pallas_src>
import functools

import jax
import jax.numpy as jnp
from jax import lax
from jax.experimental import pallas as pl
from jax.experimental.pallas import tpu as pltpu

F_PAD = 128        # padded hidden width (lane-dense)
N_LAYERS = 4
OUT_PAD = 8        # output rows (sublane group); supports out_features <= 8


def _round_up(n: int, m: int) -> int:
    return ((n + m - 1) // m) * m


def _cdiv(a: int, b: int) -> int:
    return (a + b - 1) // b


def dqn_kernel(x_ref, w_ref, b_ref, bl_ref, o_ref):
    """x_ref: [TM, IN]; w_ref: [4, 128, 128] (layer 3 stored transposed);
    b_ref: [3, 1, 128] f32; bl_ref: [8, 1] f32; o_ref: [8, TM] f32."""
    wdt = w_ref.dtype
    in_features = x_ref.shape[-1]

    # Layer 1: narrow contraction — only the first `in_features` weight rows
    # (static sublane-group slice) participate; output is the 128-lane slab.
    h = jnp.dot(x_ref[...].astype(wdt), w_ref[0, :in_features, :],
                preferred_element_type=jnp.float32)
    h = jnp.maximum(h + b_ref[0], 0.0)
    # TODO(synk): nn.Dropout(p=0.2) is identity in eval/inference mode; omitted.

    # Layers 2-3: uniform [TM,128] x [128,128] MXU passes, bias+ReLU in f32.
    for l in (1, 2):
        h = jnp.dot(h.astype(wdt), w_ref[l], preferred_element_type=jnp.float32)
        h = jnp.maximum(h + b_ref[l], 0.0)

    # Head (layer 4): weight stored transposed -> rhs-transposed matmul gives
    # the output already transposed as [OUT_PAD, TM]; rows >= out_features are
    # exactly zero (zero-padded weight rows / bias rows).
    w_head = w_ref[3, :OUT_PAD, :]                       # [8, 128]
    out_t = lax.dot_general(
        w_head, h.astype(wdt),
        dimension_numbers=(((1,), (1,)), ((), ())),
        preferred_element_type=jnp.float32)              # [8, TM]
    o_ref[...] = (out_t + bl_ref[...]).astype(o_ref.dtype)


def pack_params(params, *, dtype=jnp.float32):
    """Pack layer weights/biases into zero-padded slabs.

    Returns:
      w_pack:  [4, 128, 128] `dtype`; layers 0-2 stored [in, out], layer 3
               stored TRANSPOSED ([out, in]) so the kernel can emit a compact
               transposed output.
      b_pack:  [3, 1, 128] f32 — biases of the three ReLU layers (lane layout).
      b_last:  [8, 1] f32 — head bias as a sublane column (rows >= out zero).
    """
    w_pack = jnp.zeros((N_LAYERS, F_PAD, F_PAD), dtype)
    b_pack = jnp.zeros((N_LAYERS - 1, 1, F_PAD), jnp.float32)
    for l in range(N_LAYERS):
        w = params[f"w{l + 1}"]
        if l == N_LAYERS - 1:
            w = w.T                                       # head stored transposed
        assert w.shape[0] <= F_PAD and w.shape[1] <= F_PAD
        w_pack = w_pack.at[l, : w.shape[0], : w.shape[1]].set(w.astype(dtype))
        if l < N_LAYERS - 1:
            b = params[f"b{l + 1}"].reshape(1, -1)
            b_pack = b_pack.at[l, :, : b.shape[1]].set(b)
    out_features = params[f"w{N_LAYERS}"].shape[1]
    assert out_features <= OUT_PAD
    b_last = jnp.zeros((OUT_PAD, 1), jnp.float32)
    b_last = b_last.at[:out_features, 0].set(params[f"b{N_LAYERS}"].reshape(-1))
    return w_pack, b_pack, b_last


@functools.partial(jax.jit, static_argnames=("out_features", "block_m"))
def simple_tetris_dqn(x, w_pack, b_pack, b_last, *, out_features=1, block_m=2048):
    """x: [B, input_size] f32 -> [B, out_features] f32."""
    B, in_features = x.shape
    assert out_features <= OUT_PAD
    F = w_pack.shape[-1]

    # Balanced batch tiles; TM multiple of 128 keeps the (8, TM) store lane-dense.
    n_tiles = _cdiv(B, block_m)
    TM = _round_up(_cdiv(B, n_tiles), 128)
    B_pad = n_tiles * TM

    # Pad batch rows only (narrow 32 B/row), and only when needed.
    x_p = x if B_pad == B else jnp.zeros((B_pad, in_features), x.dtype).at[:B].set(x)

    # Work the kernel actually executes (advisory only).
    flops = 2 * B_pad * (in_features * F + 2 * F * F + OUT_PAD * F)
    bytes_accessed = (x_p.size * x_p.dtype.itemsize
                      + w_pack.size * w_pack.dtype.itemsize
                      + b_pack.size * 4 + b_last.size * 4
                      + OUT_PAD * B_pad * 4)

    out_t = pl.pallas_call(
        dqn_kernel,
        out_shape=jax.ShapeDtypeStruct((OUT_PAD, B_pad), jnp.float32),
        grid=(n_tiles,),
        in_specs=[
            pl.BlockSpec((TM, in_features), lambda i: (i, 0)),        # x: pipelined, narrow
            pl.BlockSpec((N_LAYERS, F, F), lambda i: (0, 0, 0)),      # weights: resident
            pl.BlockSpec((N_LAYERS - 1, 1, F), lambda i: (0, 0, 0)),  # hidden biases: resident
            pl.BlockSpec((OUT_PAD, 1), lambda i: (0, 0)),             # head bias column
        ],
        out_specs=pl.BlockSpec((OUT_PAD, TM), lambda i: (0, i)),
        compiler_params=pltpu.CompilerParams(
            dimension_semantics=("parallel",)),
        cost_estimate=pl.CostEstimate(
            flops=flops, transcendentals=0, bytes_accessed=bytes_accessed),
    )(x_p, w_pack, b_pack, b_last)

    # Tiny post-slice: [8, B_pad] -> [B, out_features].
    return out_t[:out_features, :B].T


def init_params(key, input_size=8, hidden_size=64, output_size=1):
    """Deterministic PyTorch-style (Kaiming-uniform-ish) initialization."""
    dims = [
        (input_size, hidden_size),
        (hidden_size, hidden_size),
        (hidden_size, hidden_size // 2),
        (hidden_size // 2, output_size),
    ]
    params = {}
    for i, (fan_in, fan_out) in enumerate(dims, start=1):
        key, kw, kb = jax.random.split(key, 3)
        bound = 1.0 / jnp.sqrt(fan_in)
        params[f"w{i}"] = jax.random.uniform(
            kw, (fan_in, fan_out), jnp.float32, -bound, bound)   # [in, out]
        params[f"b{i}"] = jax.random.uniform(
            kb, (1, fan_out), jnp.float32, -bound, bound)
    return params


def reference_forward(x, params):
    h = jnp.maximum(x @ params["w1"] + params["b1"], 0.0)
    h = jnp.maximum(h @ params["w2"] + params["b2"], 0.0)
    h = jnp.maximum(h @ params["w3"] + params["b3"], 0.0)
    return h @ params["w4"] + params["b4"]


if __name__ == "__main__":
    key = jax.random.PRNGKey(0)
    key, kx, kx2 = jax.random.split(key, 3)

    input_size, hidden_size, output_size = 8, 64, 1
    params = init_params(key, input_size, hidden_size, output_size)

    # f32 weights: small online-selection-style batch (single grid step).
    w_pack, b_pack, b_last = pack_params(params)
    x = jax.random.normal(kx, (8, input_size), jnp.float32)
    out = jax.block_until_ready(
        simple_tetris_dqn(x, w_pack, b_pack, b_last, out_features=output_size))
    ref = reference_forward(x, params)
    assert out.shape == (8, output_size)
    assert jnp.allclose(out, ref, atol=1e-5, rtol=1e-5), "mismatch vs reference (B=8)"

    # Multi-tile grid (balanced tiles, padded last tile, weights resident).
    x2 = jax.random.normal(kx2, (300, input_size), jnp.float32)
    out2 = jax.block_until_ready(
        simple_tetris_dqn(x2, w_pack, b_pack, b_last,
                          out_features=output_size, block_m=128))
    ref2 = reference_forward(x2, params)
    assert out2.shape == (300, output_size)
    assert jnp.allclose(out2, ref2, atol=1e-5, rtol=1e-5), "mismatch vs reference (B=300)"

    # bf16 packed weights (f32 accumulation / bias / ReLU) — looser tolerance.
    w_bf16, b_pack_bf, b_last_bf = pack_params(params, dtype=jnp.bfloat16)
    out3 = jax.block_until_ready(
        simple_tetris_dqn(x2, w_bf16, b_pack_bf, b_last_bf, out_features=output_size))
    assert out3.shape == (300, output_size)
    assert jnp.allclose(out3, ref2, atol=5e-2, rtol=5e-2), "mismatch vs reference (bf16)"

    print("KERNEL_OK")
</pallas_src>

<mosaic_0001>
module attributes {stable_mosaic.version = 11 : i64} {
  func.func @dqn_kernel(%arg0: i32, %arg1: memref<128x8xf32, #tpu.memory_space<vmem>>, %arg2: memref<4x128x128xf32, #tpu.memory_space<vmem>>, %arg3: memref<3x1x128xf32, #tpu.memory_space<vmem>>, %arg4: memref<8x1xf32, #tpu.memory_space<vmem>>, %arg5: memref<8x128xf32, #tpu.memory_space<vmem>>) attributes {dimension_semantics = [#tpu.dimension_semantics<parallel>], iteration_bounds = array<i64: 1>, scalar_prefetch = 0 : i64, scratch_operands = 0 : i64, tpu.core_type = #tpu.core_type<tc>, window_params = [{transform_indices = @transform_0, window_bounds = array<i64: 128, 8>}, {pipeline_mode = #tpu.pipeline_mode<synchronous>, transform_indices = @transform_1, window_bounds = array<i64: 4, 128, 128>}, {pipeline_mode = #tpu.pipeline_mode<synchronous>, transform_indices = @transform_2, window_bounds = array<i64: 3, 1, 128>}, {pipeline_mode = #tpu.pipeline_mode<synchronous>, transform_indices = @transform_3, window_bounds = array<i64: 8, 1>}, {transform_indices = @transform_4, window_bounds = array<i64: 8, 128>}]} {
    %c0 = arith.constant 0 : index
    %c0_0 = arith.constant 0 : index
    %0 = vector.load %arg1[%c0, %c0_0] : memref<128x8xf32, #tpu.memory_space<vmem>>, vector<128x8xf32>
    %c0_1 = arith.constant 0 : index
    %c0_2 = arith.constant 0 : index
    %c0_3 = arith.constant 0 : index
    %1 = vector.load %arg2[%c0_1, %c0_2, %c0_3] : memref<4x128x128xf32, #tpu.memory_space<vmem>>, vector<1x8x128xf32>
    %2 = vector.shape_cast %1 : vector<1x8x128xf32> to vector<8x128xf32>
    %cst = arith.constant dense<0.000000e+00> : vector<128x128xf32>
    %3 = tpu.matmul %0, %2, %cst {dimension_numbers = #tpu.dot_dimension_numbers<[1], [0], [0], [1], [0, 0, 1, 1], [], []>} : vector<128x8xf32>, vector<8x128xf32>, vector<128x128xf32> -> vector<128x128xf32>
    %c0_4 = arith.constant 0 : index
    %c0_5 = arith.constant 0 : index
    %c0_6 = arith.constant 0 : index
    %4 = vector.load %arg3[%c0_4, %c0_5, %c0_6] : memref<3x1x128xf32, #tpu.memory_space<vmem>>, vector<1x1x128xf32>
    %5 = vector.shape_cast %4 : vector<1x1x128xf32> to vector<1x128xf32>
    %6 = vector.broadcast %5 : vector<1x128xf32> to vector<128x128xf32>
    %7 = arith.addf %3, %6 : vector<128x128xf32>
    %cst_7 = arith.constant 0.000000e+00 : f32
    %8 = vector.broadcast %cst_7 : f32 to vector<128x128xf32>
    %9 = arith.maximumf %7, %8 : vector<128x128xf32>
    %c1 = arith.constant 1 : index
    %c0_8 = arith.constant 0 : index
    %c0_9 = arith.constant 0 : index
    %10 = vector.load %arg2[%c1, %c0_8, %c0_9] : memref<4x128x128xf32, #tpu.memory_space<vmem>>, vector<1x128x128xf32>
    %11 = vector.shape_cast %10 : vector<1x128x128xf32> to vector<128x128xf32>
    %cst_10 = arith.constant dense<0.000000e+00> : vector<128x128xf32>
    %12 = tpu.matmul %9, %11, %cst_10 {dimension_numbers = #tpu.dot_dimension_numbers<[1], [0], [0], [1], [0, 0, 1, 1], [], []>} : vector<128x128xf32>, vector<128x128xf32>, vector<128x128xf32> -> vector<128x128xf32>
    %c1_11 = arith.constant 1 : index
    %c0_12 = arith.constant 0 : index
    %c0_13 = arith.constant 0 : index
    %13 = vector.load %arg3[%c1_11, %c0_12, %c0_13] : memref<3x1x128xf32, #tpu.memory_space<vmem>>, vector<1x1x128xf32>
    %14 = vector.shape_cast %13 : vector<1x1x128xf32> to vector<1x128xf32>
    %15 = vector.broadcast %14 : vector<1x128xf32> to vector<128x128xf32>
    %16 = arith.addf %12, %15 : vector<128x128xf32>
    %cst_14 = arith.constant 0.000000e+00 : f32
    %17 = vector.broadcast %cst_14 : f32 to vector<128x128xf32>
    %18 = arith.maximumf %16, %17 : vector<128x128xf32>
    %c2 = arith.constant 2 : index
    %c0_15 = arith.constant 0 : index
    %c0_16 = arith.constant 0 : index
    %19 = vector.load %arg2[%c2, %c0_15, %c0_16] : memref<4x128x128xf32, #tpu.memory_space<vmem>>, vector<1x128x128xf32>
    %20 = vector.shape_cast %19 : vector<1x128x128xf32> to vector<128x128xf32>
    %cst_17 = arith.constant dense<0.000000e+00> : vector<128x128xf32>
    %21 = tpu.matmul %18, %20, %cst_17 {dimension_numbers = #tpu.dot_dimension_numbers<[1], [0], [0], [1], [0, 0, 1, 1], [], []>} : vector<128x128xf32>, vector<128x128xf32>, vector<128x128xf32> -> vector<128x128xf32>
    %c2_18 = arith.constant 2 : index
    %c0_19 = arith.constant 0 : index
    %c0_20 = arith.constant 0 : index
    %22 = vector.load %arg3[%c2_18, %c0_19, %c0_20] : memref<3x1x128xf32, #tpu.memory_space<vmem>>, vector<1x1x128xf32>
    %23 = vector.shape_cast %22 : vector<1x1x128xf32> to vector<1x128xf32>
    %24 = vector.broadcast %23 : vector<1x128xf32> to vector<128x128xf32>
    %25 = arith.addf %21, %24 : vector<128x128xf32>
    %cst_21 = arith.constant 0.000000e+00 : f32
    %26 = vector.broadcast %cst_21 : f32 to vector<128x128xf32>
    %27 = arith.maximumf %25, %26 : vector<128x128xf32>
    %c3 = arith.constant 3 : index
    %c0_22 = arith.constant 0 : index
    %c0_23 = arith.constant 0 : index
    %28 = vector.load %arg2[%c3, %c0_22, %c0_23] : memref<4x128x128xf32, #tpu.memory_space<vmem>>, vector<1x8x128xf32>
    %29 = vector.shape_cast %28 : vector<1x8x128xf32> to vector<8x128xf32>
    %cst_24 = arith.constant dense<0.000000e+00> : vector<8x128xf32>
    %30 = tpu.matmul %29, %27, %cst_24 {dimension_numbers = #tpu.dot_dimension_numbers<[1], [1], [0], [0], [0, 0, 1, 0], [], []>} : vector<8x128xf32>, vector<128x128xf32>, vector<8x128xf32> -> vector<8x128xf32>
    %c0_25 = arith.constant 0 : index
    %c0_26 = arith.constant 0 : index
    %31 = vector.load %arg4[%c0_25, %c0_26] : memref<8x1xf32, #tpu.memory_space<vmem>>, vector<8x1xf32>
    %32 = vector.broadcast %31 : vector<8x1xf32> to vector<8x128xf32>
    %33 = arith.addf %30, %32 : vector<8x128xf32>
    %c0_27 = arith.constant 0 : index
    %c0_28 = arith.constant 0 : index
    %34 = vector.load %arg5[%c0_27, %c0_28] : memref<8x128xf32, #tpu.memory_space<vmem>>, vector<8x128xf32>
    tpu.vector_store %arg5[%c0_27, %c0_28], %33 {strides = array<i32>} : memref<8x128xf32, #tpu.memory_space<vmem>>, vector<8x128xf32>,
    return
  }
  func.func @transform_0(%arg0: i32) -> (i32, i32) {
    %c0_i32 = arith.constant 0 : i32
    %c0_i32_0 = arith.constant 0 : i32
    return %arg0, %c0_i32 : i32, i32
  }
  func.func @transform_1(%arg0: i32) -> (i32, i32, i32) {
    %c0_i32 = arith.constant 0 : i32
    %c0_i32_0 = arith.constant 0 : i32
    %c0_i32_1 = arith.constant 0 : i32
    %c0_i32_2 = arith.constant 0 : i32
    return %c0_i32, %c0_i32_0, %c0_i32_1 : i32, i32, i32
  }
  func.func @transform_2(%arg0: i32) -> (i32, i32, i32) {
    %c0_i32 = arith.constant 0 : i32
    %c0_i32_0 = arith.constant 0 : i32
    %c0_i32_1 = arith.constant 0 : i32
    %c0_i32_2 = arith.constant 0 : i32
    return %c0_i32, %c0_i32_0, %c0_i32_1 : i32, i32, i32
  }
  func.func @transform_3(%arg0: i32) -> (i32, i32) {
    %c0_i32 = arith.constant 0 : i32
    %c0_i32_0 = arith.constant 0 : i32
    %c0_i32_1 = arith.constant 0 : i32
    return %c0_i32, %c0_i32_0 : i32, i32
  }
  func.func @transform_4(%arg0: i32) -> (i32, i32) {
    %c0_i32 = arith.constant 0 : i32
    %c0_i32_0 = arith.constant 0 : i32
    return %c0_i32, %arg0 : i32, i32
  }
}

</mosaic_0001>

<llo_original>
// kernel: simple_tetris_dqn.1
$region0: #{simple_tetris_dqn.1}
  #allocation0 [shape = 'u32[]', space=smem, size = 0x4, offset = 0x4, fixed_abs, tag = 'smem constant byte address 0x4 - core index']
  #allocation1 [shape = 'u32[144,128]{1,0:T(1,128)}', space=vmem, size = 0x12000, scoped, tag = 'internal scratch']
  %s0 = inlined_call_operand.vmem [shape: f32[128,8], index: 0, kind: input, shape index: {}]
  %s1 = inlined_call_operand.hbm [shape: f32[4,128,128], index: 1, kind: input, shape index: {}]
  %s2 = inlined_call_operand.vmem [shape: f32[3,1,128], index: 2, kind: input, shape index: {}]
  %s3 = inlined_call_operand.vmem [shape: f32[8,1], index: 3, kind: input, shape index: {}]
  %s4 = inlined_call_operand.vmem [shape: f32[8,128], index: 4, kind: output, shape index: {}]
  %s5 = sld [smem:[#allocation0]]
  $region30: #{simple_tetris_dqn.1} parent=0
    _
  %s7 = ssub.s32 1, %s5
  %s8 = scalar_select 0, %s7, %s5
  $region1: #{simple_tetris_dqn.1} parent=0
    #allocation2 [shape = 'u8[262144]{0}', space=vmem, size = 0x40000, scoped, tag = 'input window, operand 1, single buffered']
    #allocation3 [shape = 's32[1]{0}', space=sflag, size = 0x4, scoped, tag = 'scoped memory for simple_tetris_dqn.1']
    %9 = vsyncpa [#allocation3], 0
    // Predicated region
    $region2: #{simple_tetris_dqn.1} parent=1 // pred_check
      _
    $region3: #{simple_tetris_dqn.1} parent=1 // pred_check_branch
      %11 = sbr.rel (0) target = $region5
    $region4: #{simple_tetris_dqn.1} parent=1 // pred_region
      _
    $region5: #{simple_tetris_dqn.1} parent=1 // pred_fallthru
      _
    // Predicated region
    $region6: #{simple_tetris_dqn.1} parent=1 // pred_check
      _
    $region7: #{simple_tetris_dqn.1} parent=1 // pred_check_branch
      %13 = sbr.rel (0) target = $region9
    $region8: #{simple_tetris_dqn.1} parent=1 // pred_region
      %s15 = ssub.s32 8192, 8192
      %16 = vsyncadd [#allocation3], %s15
      %s17 = sshll.u32 [#allocation2], 4
      %s18 = int_to_ptr.vmem [resolvable:$true] %s17
      %23 = dma.hbm_to_vmem [thread:$0]  %s1, 8192, %s18, [#allocation3], 128, 128, 8
    $region9: #{simple_tetris_dqn.1} parent=1 // pred_fallthru
      _
    // Predicated region
    $region10: #{simple_tetris_dqn.1} parent=1 // pred_check
      _
    $region11: #{simple_tetris_dqn.1} parent=1 // pred_check_branch
      %25 = sbr.rel (0) target = $region13
    $region12: #{simple_tetris_dqn.1} parent=1 // pred_region
      _
    $region13: #{simple_tetris_dqn.1} parent=1 // pred_fallthru
      _
    // Predicated region
    $region14: #{simple_tetris_dqn.1} parent=1 // pred_check
      _
    $region15: #{simple_tetris_dqn.1} parent=1 // pred_check_branch
      %27 = sbr.rel (0) target = $region17
    $region16: #{simple_tetris_dqn.1} parent=1 // pred_region
      _
    $region17: #{simple_tetris_dqn.1} parent=1 // pred_fallthru
      _
    // Predicated region
    $region18: #{simple_tetris_dqn.1} parent=1 // pred_check
      _
    $region19: #{simple_tetris_dqn.1} parent=1 // pred_check_branch
      %29 = sbr.rel (0) target = $region21
    $region20: #{simple_tetris_dqn.1} parent=1 // pred_region
      %30 = dma.done [#allocation3], 8192
    $region21: #{simple_tetris_dqn.1} parent=1 // pred_fallthru
      _
    %v31 = vld [vmem:[%s0] sm:$0xff]
    %v32 = vld [vmem:[%s0 + $0x8] sm:$0xff]
    %v33 = vld [vmem:[%s0 + $0x10] sm:$0xff]
    %v34 = vld [vmem:[%s0 + $0x18] sm:$0xff]
    %v35 = vld [vmem:[%s0 + $0x20] sm:$0xff]
    %v36 = vld [vmem:[%s0 + $0x28] sm:$0xff]
    %v37 = vld [vmem:[%s0 + $0x30] sm:$0xff]
    %v38 = vld [vmem:[%s0 + $0x38] sm:$0xff]
    %v39 = vld [vmem:[%s0 + $0x40] sm:$0xff]
    %v40 = vld [vmem:[%s0 + $0x48] sm:$0xff]
    %v41 = vld [vmem:[%s0 + $0x50] sm:$0xff]
    %v42 = vld [vmem:[%s0 + $0x58] sm:$0xff]
    %v43 = vld [vmem:[%s0 + $0x60] sm:$0xff]
    %v44 = vld [vmem:[%s0 + $0x68] sm:$0xff]
    %v45 = vld [vmem:[%s0 + $0x70] sm:$0xff]
    %v46 = vld [vmem:[%s0 + $0x78] sm:$0xff]
    %v47 = vld [vmem:[#allocation2] sm:$0xff]
    %v48 = vld [vmem:[%s2] sm:$0x1]
    %v50 = vlaneseq
    %v51 = vshrl.u32 %v50, 7
    %v52 = vsub.s32 0, %v51
    %v53 = vrot.slane %v48, %v52
    %vm55 = vcmask 64512
    %v57 = vsel %vm55, %v31, 0
    %v60 = vsel %vm55, %v32, 0
    %v63 = vsel %vm55, %v33, 0
    %v66 = vsel %vm55, %v34, 0
    %v69 = vsel %vm55, %v35, 0
    %v72 = vsel %vm55, %v36, 0
    %v75 = vsel %vm55, %v37, 0
    %v78 = vsel %vm55, %v38, 0
    %v81 = vsel %vm55, %v39, 0
    %v84 = vsel %vm55, %v40, 0
    %v87 = vsel %vm55, %v41, 0
    %v90 = vsel %vm55, %v42, 0
    %v93 = vsel %vm55, %v43, 0
    %v96 = vsel %vm55, %v44, 0
    %v99 = vsel %vm55, %v45, 0
    %v102 = vsel %vm55, %v46, 0
    %104 = vmatprep.subr.mxu0 0.0
    %105 = vmatpush1.msra.mxu0 %v47
    %106 = vmatprep.subr.mxu0 0.0
    %107 = vmatpush1.msra.mxu0 0.0
    %108 = vmatprep.subr.mxu0 0.0
    %109 = vmatpush1.msra.mxu0 0.0
    %110 = vmatprep.subr.mxu0 0.0
    %111 = vmatpush1.msra.mxu0 0.0
    %112 = vmatprep.subr.mxu0 0.0
    %113 = vmatpush1.msra.mxu0 0.0
    %114 = vmatprep.subr.mxu0 0.0
    %115 = vmatpush1.msra.mxu0 0.0
    %116 = vmatprep.subr.mxu0 0.0
    %117 = vmatpush1.msra.mxu0 0.0
    %118 = vmatprep.subr.mxu0 0.0
    %119 = vmatpush1.msra.mxu0 0.0
    %120 = vmatprep.subr.mxu0 0.0
    %121 = vmatpush1.msra.mxu0 0.0
    %122 = vmatprep.subr.mxu0 0.0
    %123 = vmatpush1.msra.mxu0 0.0
    %124 = vmatprep.subr.mxu0 0.0
    %125 = vmatpush1.msra.mxu0 0.0
    %126 = vmatprep.subr.mxu0 0.0
    %127 = vmatpush1.msra.mxu0 0.0
    %128 = vmatprep.subr.mxu0 0.0
    %129 = vmatpush1.msra.mxu0 0.0
    %130 = vmatprep.subr.mxu0 0.0
    %131 = vmatpush1.msra.mxu0 0.0
    %132 = vmatprep.subr.mxu0 0.0
    %133 = vmatpush1.msra.mxu0 0.0
    %134 = vmatprep.subr.mxu0 0.0
    %135 = vmatpush1.msra.mxu0 0.0
    %136 = vmatprep.subr.mxu0 0.0
    %137 = vmatpush1.msra.mxu0 0.0
    %138 = vmatprep.subr.mxu0 0.0
    %139 = vmatpush1.msra.mxu0 0.0
    %140 = vmatprep.subr.mxu0 0.0
    %141 = vmatpush1.msra.mxu0 0.0
    %142 = vmatprep.subr.mxu0 0.0
    %143 = vmatpush1.msra.mxu0 0.0
    %144 = vmatprep.subr.mxu0 0.0
    %145 = vmatpush1.msra.mxu0 0.0
    %146 = vmatprep.subr.mxu0 0.0
    %147 = vmatpush1.msra.mxu0 0.0
    %148 = vmatprep.subr.mxu0 0.0
    %149 = vmatpush1.msra.mxu0 0.0
    %150 = vmatprep.subr.mxu0 0.0
    %151 = vmatpush1.msra.mxu0 0.0
    %152 = vmatprep.subr.mxu0 0.0
    %153 = vmatpush1.msra.mxu0 0.0
    %154 = vmatprep.subr.mxu0 0.0
    %155 = vmatpush1.msra.mxu0 0.0
    %156 = vmatprep.subr.mxu0 0.0
    %157 = vmatpush1.msra.mxu0 0.0
    %158 = vmatprep.subr.mxu0 0.0
    %159 = vmatpush1.msra.mxu0 0.0
    %160 = vmatprep.subr.mxu0 0.0
    %161 = vmatpush1.msra.mxu0 0.0
    %162 = vmatprep.subr.mxu0 0.0
    %163 = vmatpush1.msra.mxu0 0.0
    %164 = vmatprep.subr.mxu0 0.0
    %165 = vmatpush1.msra.mxu0 0.0
    %166 = vmatprep.subr.mxu0 0.0
    %167 = vmatpush1.msra.mxu0 0.0
    %168 = vmatprep.mubr.f32.mxu0 0.0
    %169 = vmatmul.mubr.f32.gmra.mrb[0].mxu0 %v57
    %v170 = vpop.f32.mrb[0].mxu0
    %v171 = vadd.f32 %v53, %v170
    %v172 = vpop.f32.mrb[0].mxu0
    %173 = vmatprep.mubr.f32.mxu0 0.0
    %174 = vmatmul.mubr.f32.gmra.mrb[0].mxu0 %v60
    %v175 = vpop.f32.mrb[0].mxu0
    %v176 = vadd.f32 %v53, %v175
    %v177 = vpop.f32.mrb[0].mxu0
    %178 = vmatprep.mubr.f32.mxu0 0.0
    %179 = vmatmul.mubr.f32.gmra.mrb[0].mxu0 %v63
    %v180 = vpop.f32.mrb[0].mxu0
    %v181 = vadd.f32 %v53, %v180
    %v182 = vpop.f32.mrb[0].mxu0
    %183 = vmatprep.mubr.f32.mxu0 0.0
    %184 = vmatmul.mubr.f32.gmra.mrb[0].mxu0 %v66
    %v185 = vpop.f32.mrb[0].mxu0
    %v186 = vadd.f32 %v53, %v185
    %v187 = vpop.f32.mrb[0].mxu0
    %188 = vmatprep.mubr.f32.mxu0 0.0
    %189 = vmatmul.mubr.f32.gmra.mrb[0].mxu0 %v69
    %v190 = vpop.f32.mrb[0].mxu0
    %v191 = vadd.f32 %v53, %v190
    %v192 = vpop.f32.mrb[0].mxu0
    %193 = vmatprep.mubr.f32.mxu0 0.0
    %194 = vmatmul.mubr.f32.gmra.mrb[0].mxu0 %v72
    %v195 = vpop.f32.mrb[0].mxu0
    %v196 = vadd.f32 %v53, %v195
    %v197 = vpop.f32.mrb[0].mxu0
    %198 = vmatprep.mubr.f32.mxu0 0.0
    %199 = vmatmul.mubr.f32.gmra.mrb[0].mxu0 %v75
    %v200 = vpop.f32.mrb[0].mxu0
    %v201 = vadd.f32 %v53, %v200
    %v202 = vpop.f32.mrb[0].mxu0
    %203 = vmatprep.mubr.f32.mxu0 0.0
    %204 = vmatmul.mubr.f32.gmra.mrb[0].mxu0 %v78
    %v205 = vpop.f32.mrb[0].mxu0
    %v206 = vadd.f32 %v53, %v205
    %v207 = vpop.f32.mrb[0].mxu0
    %208 = vmatprep.mubr.f32.mxu0 0.0
    %209 = vmatmul.mubr.f32.gmra.mrb[0].mxu0 %v81
    %v210 = vpop.f32.mrb[0].mxu0
    %v211 = vadd.f32 %v53, %v210
    %v212 = vpop.f32.mrb[0].mxu0
    %213 = vmatprep.mubr.f32.mxu0 0.0
    %214 = vmatmul.mubr.f32.gmra.mrb[0].mxu0 %v84
    %v215 = vpop.f32.mrb[0].mxu0
    %v216 = vadd.f32 %v53, %v215
    %v217 = vpop.f32.mrb[0].mxu0
    %218 = vmatprep.mubr.f32.mxu0 0.0
    %219 = vmatmul.mubr.f32.gmra.mrb[0].mxu0 %v87
    %v220 = vpop.f32.mrb[0].mxu0
    %v221 = vadd.f32 %v53, %v220
    %v222 = vpop.f32.mrb[0].mxu0
    %223 = vmatprep.mubr.f32.mxu0 0.0
    %224 = vmatmul.mubr.f32.gmra.mrb[0].mxu0 %v90
    %v225 = vpop.f32.mrb[0].mxu0
    %v226 = vadd.f32 %v53, %v225
    %v227 = vpop.f32.mrb[0].mxu0
    %228 = vmatprep.mubr.f32.mxu0 0.0
    %229 = vmatmul.mubr.f32.gmra.mrb[0].mxu0 %v93
    %v230 = vpop.f32.mrb[0].mxu0
    %v231 = vadd.f32 %v53, %v230
    %v232 = vpop.f32.mrb[0].mxu0
    %233 = vmatprep.mubr.f32.mxu0 0.0
    %234 = vmatmul.mubr.f32.gmra.mrb[0].mxu0 %v96
    %v235 = vpop.f32.mrb[0].mxu0
    %v236 = vadd.f32 %v53, %v235
    %v237 = vpop.f32.mrb[0].mxu0
    %238 = vmatprep.mubr.f32.mxu0 0.0
    %239 = vmatmul.mubr.f32.gmra.mrb[0].mxu0 %v99
    %v240 = vpop.f32.mrb[0].mxu0
    %v241 = vadd.f32 %v53, %v240
    %v242 = vpop.f32.mrb[0].mxu0
    %243 = vmatprep.mubr.f32.mxu0 0.0
    %244 = vmatmul.mubr.f32.gmra.mrb[0].mxu0 %v102
    %v245 = vpop.f32.mrb[0].mxu0
    %v246 = vadd.f32 %v53, %v245
    %v247 = vpop.f32.mrb[0].mxu0
    %248 = vdwg.mxu0
    %v249 = vmax.f32 %v171, 0.0
    %v250 = vmax.f32 %v176, 0.0
    %v251 = vmax.f32 %v181, 0.0
    %v252 = vmax.f32 %v186, 0.0
    %v253 = vmax.f32 %v191, 0.0
    %v254 = vmax.f32 %v196, 0.0
    %v255 = vmax.f32 %v201, 0.0
    %v256 = vmax.f32 %v206, 0.0
    %v257 = vmax.f32 %v211, 0.0
    %v258 = vmax.f32 %v216, 0.0
    %v259 = vmax.f32 %v221, 0.0
    %v260 = vmax.f32 %v226, 0.0
    %v261 = vmax.f32 %v231, 0.0
    %v262 = vmax.f32 %v236, 0.0
    %v263 = vmax.f32 %v241, 0.0
    %v264 = vmax.f32 %v246, 0.0
    %s265 = scalar_lea.vmem [#allocation2], 128
    %v266 = vld [vmem:[%s265] sm:$0xff]
    %v267 = vld [vmem:[%s265 + $0x8] sm:$0xff]
    %v268 = vld [vmem:[%s265 + $0x10] sm:$0xff]
    %v269 = vld [vmem:[%s265 + $0x18] sm:$0xff]
    %v270 = vld [vmem:[%s265 + $0x20] sm:$0xff]
    %v271 = vld [vmem:[%s265 + $0x28] sm:$0xff]
    %v272 = vld [vmem:[%s265 + $0x30] sm:$0xff]
    %v273 = vld [vmem:[%s265 + $0x38] sm:$0xff]
    %v274 = vld [vmem:[%s265 + $0x40] sm:$0xff]
    %v275 = vld [vmem:[%s265 + $0x48] sm:$0xff]
    %v276 = vld [vmem:[%s265 + $0x50] sm:$0xff]
    %v277 = vld [vmem:[%s265 + $0x58] sm:$0xff]
    %v278 = vld [vmem:[%s265 + $0x60] sm:$0xff]
    %v279 = vld [vmem:[%s265 + $0x68] sm:$0xff]
    %v280 = vld [vmem:[%s265 + $0x70] sm:$0xff]
    %v281 = vld [vmem:[%s265 + $0x78] sm:$0xff]
    %s282 = scalar_lea.vmem %s2, 1
    %v283 = vld [vmem:[%s282] sm:$0x1]
    %v285 = vlaneseq
    %v286 = vshrl.u32 %v285, 7
    %v287 = vsub.s32 0, %v286
    %v288 = vrot.slane %v283, %v287
    %290 = vmatprep.subr.mxu0 0.0
    %291 = vmatpush1.msra.mxu0 %v266
    %292 = vmatprep.subr.mxu0 0.0
    %293 = vmatpush1.msra.mxu0 %v267
    %294 = vmatprep.subr.mxu0 0.0
    %295 = vmatpush1.msra.mxu0 %v268
    %296 = vmatprep.subr.mxu0 0.0
    %297 = vmatpush1.msra.mxu0 %v269
    %298 = vmatprep.subr.mxu0 0.0
    %299 = vmatpush1.msra.mxu0 %v270
    %300 = vmatprep.subr.mxu0 0.0
    %301 = vmatpush1.msra.mxu0 %v271
    %302 = vmatprep.subr.mxu0 0.0
    %303 = vmatpush1.msra.mxu0 %v272
    %304 = vmatprep.subr.mxu0 0.0
    %305 = vmatpush1.msra.mxu0 %v273
    %306 = vmatprep.subr.mxu0 0.0
    %307 = vmatpush1.msra.mxu0 %v274
    %308 = vmatprep.subr.mxu0 0.0
    %309 = vmatpush1.msra.mxu0 %v275
    %310 = vmatprep.subr.mxu0 0.0
    %311 = vmatpush1.msra.mxu0 %v276
    %312 = vmatprep.subr.mxu0 0.0
    %313 = vmatpush1.msra.mxu0 %v277
    %314 = vmatprep.subr.mxu0 0.0
    %315 = vmatpush1.msra.mxu0 %v278
    %316 = vmatprep.subr.mxu0 0.0
    %317 = vmatpush1.msra.mxu0 %v279
    %318 = vmatprep.subr.mxu0 0.0
    %319 = vmatpush1.msra.mxu0 %v280
    %320 = vmatprep.subr.mxu0 0.0
    %321 = vmatpush1.msra.mxu0 %v281
    %322 = vmatprep.subr.mxu0 0.0
    %323 = vmatpush1.msra.mxu0 0.0
    %324 = vmatprep.subr.mxu0 0.0
    %325 = vmatpush1.msra.mxu0 0.0
    %326 = vmatprep.subr.mxu0 0.0
    %327 = vmatpush1.msra.mxu0 0.0
    %328 = vmatprep.subr.mxu0 0.0
    %329 = vmatpush1.msra.mxu0 0.0
    %330 = vmatprep.subr.mxu0 0.0
    %331 = vmatpush1.msra.mxu0 0.0
    %332 = vmatprep.subr.mxu0 0.0
    %333 = vmatpush1.msra.mxu0 0.0
    %334 = vmatprep.subr.mxu0 0.0
    %335 = vmatpush1.msra.mxu0 0.0
    %336 = vmatprep.subr.mxu0 0.0
    %337 = vmatpush1.msra.mxu0 0.0
    %338 = vmatprep.subr.mxu0 0.0
    %339 = vmatpush1.msra.mxu0 0.0
    %340 = vmatprep.subr.mxu0 0.0
    %341 = vmatpush1.msra.mxu0 0.0
    %342 = vmatprep.subr.mxu0 0.0
    %343 = vmatpush1.msra.mxu0 0.0
    %344 = vmatprep.subr.mxu0 0.0
    %345 = vmatpush1.msra.mxu0 0.0
    %346 = vmatprep.subr.mxu0 0.0
    %347 = vmatpush1.msra.mxu0 0.0
    %348 = vmatprep.subr.mxu0 0.0
    %349 = vmatpush1.msra.mxu0 0.0
    %350 = vmatprep.subr.mxu0 0.0
    %351 = vmatpush1.msra.mxu0 0.0
    %352 = vmatprep.subr.mxu0 0.0
    %353 = vmatpush1.msra.mxu0 0.0
    %354 = vmatprep.mubr.f32.mxu0 0.0
    %355 = vmatmul.mubr.f32.gmra.mrb[0].mxu0 %v249
    %v356 = vpop.f32.mrb[0].mxu0
    %v357 = vadd.f32 %v288, %v356
    %v358 = vpop.f32.mrb[0].mxu0
    %359 = vmatprep.mubr.f32.mxu0 0.0
    %360 = vmatmul.mubr.f32.gmra.mrb[0].mxu0 %v250
    %v361 = vpop.f32.mrb[0].mxu0
    %v362 = vadd.f32 %v288, %v361
    %v363 = vpop.f32.mrb[0].mxu0
    %364 = vmatprep.mubr.f32.mxu0 0.0
    %365 = vmatmul.mubr.f32.gmra.mrb[0].mxu0 %v251
    %v366 = vpop.f32.mrb[0].mxu0
    %v367 = vadd.f32 %v288, %v366
    %v368 = vpop.f32.mrb[0].mxu0
    %369 = vmatprep.mubr.f32.mxu0 0.0
    %370 = vmatmul.mubr.f32.gmra.mrb[0].mxu0 %v252
    %v371 = vpop.f32.mrb[0].mxu0
    %v372 = vadd.f32 %v288, %v371
    %v373 = vpop.f32.mrb[0].mxu0
    %374 = vmatprep.mubr.f32.mxu0 0.0
    %375 = vmatmul.mubr.f32.gmra.mrb[0].mxu0 %v253
    %v376 = vpop.f32.mrb[0].mxu0
    %v377 = vadd.f32 %v288, %v376
    %v378 = vpop.f32.mrb[0].mxu0
    %379 = vmatprep.mubr.f32.mxu0 0.0
    %380 = vmatmul.mubr.f32.gmra.mrb[0].mxu0 %v254
    %v381 = vpop.f32.mrb[0].mxu0
    %v382 = vadd.f32 %v288, %v381
    %v383 = vpop.f32.mrb[0].mxu0
    %384 = vmatprep.mubr.f32.mxu0 0.0
    %385 = vmatmul.mubr.f32.gmra.mrb[0].mxu0 %v255
    %v386 = vpop.f32.mrb[0].mxu0
    %v387 = vadd.f32 %v288, %v386
    %v388 = vpop.f32.mrb[0].mxu0
    %389 = vmatprep.mubr.f32.mxu0 0.0
    %390 = vmatmul.mubr.f32.gmra.mrb[0].mxu0 %v256
    %v391 = vpop.f32.mrb[0].mxu0
    %v392 = vadd.f32 %v288, %v391
    %v393 = vpop.f32.mrb[0].mxu0
    %394 = vmatprep.mubr.f32.mxu0 0.0
    %395 = vmatmul.mubr.f32.gmra.mrb[0].mxu0 %v257
    %v396 = vpop.f32.mrb[0].mxu0
    %v397 = vadd.f32 %v288, %v396
    %v398 = vpop.f32.mrb[0].mxu0
    %399 = vmatprep.mubr.f32.mxu0 0.0
    %400 = vmatmul.mubr.f32.gmra.mrb[0].mxu0 %v258
    %v401 = vpop.f32.mrb[0].mxu0
    %v402 = vadd.f32 %v288, %v401
    %v403 = vpop.f32.mrb[0].mxu0
    %404 = vmatprep.mubr.f32.mxu0 0.0
    %405 = vmatmul.mubr.f32.gmra.mrb[0].mxu0 %v259
    %v406 = vpop.f32.mrb[0].mxu0
    %v407 = vadd.f32 %v288, %v406
    %v408 = vpop.f32.mrb[0].mxu0
    %409 = vmatprep.mubr.f32.mxu0 0.0
    %410 = vmatmul.mubr.f32.gmra.mrb[0].mxu0 %v260
    %v411 = vpop.f32.mrb[0].mxu0
    %v412 = vadd.f32 %v288, %v411
    %v413 = vpop.f32.mrb[0].mxu0
    %414 = vmatprep.mubr.f32.mxu0 0.0
    %415 = vmatmul.mubr.f32.gmra.mrb[0].mxu0 %v261
    %v416 = vpop.f32.mrb[0].mxu0
    %v417 = vadd.f32 %v288, %v416
    %v418 = vpop.f32.mrb[0].mxu0
    %419 = vmatprep.mubr.f32.mxu0 0.0
    %420 = vmatmul.mubr.f32.gmra.mrb[0].mxu0 %v262
    %v421 = vpop.f32.mrb[0].mxu0
    %v422 = vadd.f32 %v288, %v421
    %v423 = vpop.f32.mrb[0].mxu0
    %424 = vmatprep.mubr.f32.mxu0 0.0
    %425 = vmatmul.mubr.f32.gmra.mrb[0].mxu0 %v263
    %v426 = vpop.f32.mrb[0].mxu0
    %v427 = vadd.f32 %v288, %v426
    %v428 = vpop.f32.mrb[0].mxu0
    %429 = vmatprep.mubr.f32.mxu0 0.0
    %430 = vmatmul.mubr.f32.gmra.mrb[0].mxu0 %v264
    %v431 = vpop.f32.mrb[0].mxu0
    %v432 = vadd.f32 %v288, %v431
    %v433 = vpop.f32.mrb[0].mxu0
    %434 = vdwg.mxu0
    %v435 = vmax.f32 %v357, 0.0
    %v436 = vmax.f32 %v362, 0.0
    %v437 = vmax.f32 %v367, 0.0
    %v438 = vmax.f32 %v372, 0.0
    %v439 = vmax.f32 %v377, 0.0
    %v440 = vmax.f32 %v382, 0.0
    %v441 = vmax.f32 %v387, 0.0
    %v442 = vmax.f32 %v392, 0.0
    %v443 = vmax.f32 %v397, 0.0
    %v444 = vmax.f32 %v402, 0.0
    %v445 = vmax.f32 %v407, 0.0
    %v446 = vmax.f32 %v412, 0.0
    %v447 = vmax.f32 %v417, 0.0
    %v448 = vmax.f32 %v422, 0.0
    %v449 = vmax.f32 %v427, 0.0
    %v450 = vmax.f32 %v432, 0.0
    %s451 = scalar_lea.vmem [#allocation2], 256
    %v452 = vld [vmem:[%s451] sm:$0xff]
    %v453 = vld [vmem:[%s451 + $0x8] sm:$0xff]
    %v454 = vld [vmem:[%s451 + $0x10] sm:$0xff]
    %v455 = vld [vmem:[%s451 + $0x18] sm:$0xff]
    %v456 = vld [vmem:[%s451 + $0x20] sm:$0xff]
    %v457 = vld [vmem:[%s451 + $0x28] sm:$0xff]
    %v458 = vld [vmem:[%s451 + $0x30] sm:$0xff]
    %v459 = vld [vmem:[%s451 + $0x38] sm:$0xff]
    %v460 = vld [vmem:[%s451 + $0x40] sm:$0xff]
    %v461 = vld [vmem:[%s451 + $0x48] sm:$0xff]
    %v462 = vld [vmem:[%s451 + $0x50] sm:$0xff]
    %v463 = vld [vmem:[%s451 + $0x58] sm:$0xff]
    %v464 = vld [vmem:[%s451 + $0x60] sm:$0xff]
    %v465 = vld [vmem:[%s451 + $0x68] sm:$0xff]
    %v466 = vld [vmem:[%s451 + $0x70] sm:$0xff]
    %v467 = vld [vmem:[%s451 + $0x78] sm:$0xff]
    %s468 = scalar_lea.vmem %s2, 2
    %v469 = vld [vmem:[%s468] sm:$0x1]
    %v471 = vlaneseq
    %v472 = vshrl.u32 %v471, 7
    %v473 = vsub.s32 0, %v472
    %v474 = vrot.slane %v469, %v473
    %476 = vmatprep.subr.mxu0 0.0
    %477 = vmatpush1.msra.mxu0 %v452
    %478 = vmatprep.subr.mxu0 0.0
    %479 = vmatpush1.msra.mxu0 %v453
    %480 = vmatprep.subr.mxu0 0.0
    %481 = vmatpush1.msra.mxu0 %v454
    %482 = vmatprep.subr.mxu0 0.0
    %483 = vmatpush1.msra.mxu0 %v455
    %484 = vmatprep.subr.mxu0 0.0
    %485 = vmatpush1.msra.mxu0 %v456
    %486 = vmatprep.subr.mxu0 0.0
    %487 = vmatpush1.msra.mxu0 %v457
    %488 = vmatprep.subr.mxu0 0.0
    %489 = vmatpush1.msra.mxu0 %v458
    %490 = vmatprep.subr.mxu0 0.0
    %491 = vmatpush1.msra.mxu0 %v459
    %492 = vmatprep.subr.mxu0 0.0
    %493 = vmatpush1.msra.mxu0 %v460
    %494 = vmatprep.subr.mxu0 0.0
    %495 = vmatpush1.msra.mxu0 %v461
    %496 = vmatprep.subr.mxu0 0.0
    %497 = vmatpush1.msra.mxu0 %v462
    %498 = vmatprep.subr.mxu0 0.0
    %499 = vmatpush1.msra.mxu0 %v463
    %500 = vmatprep.subr.mxu0 0.0
    %501 = vmatpush1.msra.mxu0 %v464
    %502 = vmatprep.subr.mxu0 0.0
    %503 = vmatpush1.msra.mxu0 %v465
    %504 = vmatprep.subr.mxu0 0.0
    %505 = vmatpush1.msra.mxu0 %v466
    %506 = vmatprep.subr.mxu0 0.0
    %507 = vmatpush1.msra.mxu0 %v467
    %508 = vmatprep.subr.mxu0 0.0
    %509 = vmatpush1.msra.mxu0 0.0
    %510 = vmatprep.subr.mxu0 0.0
    %511 = vmatpush1.msra.mxu0 0.0
    %512 = vmatprep.subr.mxu0 0.0
    %513 = vmatpush1.msra.mxu0 0.0
    %514 = vmatprep.subr.mxu0 0.0
    %515 = vmatpush1.msra.mxu0 0.0
    %516 = vmatprep.subr.mxu0 0.0
    %517 = vmatpush1.msra.mxu0 0.0
    %518 = vmatprep.subr.mxu0 0.0
    %519 = vmatpush1.msra.mxu0 0.0
    %520 = vmatprep.subr.mxu0 0.0
    %521 = vmatpush1.msra.mxu0 0.0
    %522 = vmatprep.subr.mxu0 0.0
    %523 = vmatpush1.msra.mxu0 0.0
    %524 = vmatprep.subr.mxu0 0.0
    %525 = vmatpush1.msra.mxu0 0.0
    %526 = vmatprep.subr.mxu0 0.0
    %527 = vmatpush1.msra.mxu0 0.0
    %528 = vmatprep.subr.mxu0 0.0
    %529 = vmatpush1.msra.mxu0 0.0
    %530 = vmatprep.subr.mxu0 0.0
    %531 = vmatpush1.msra.mxu0 0.0
    %532 = vmatprep.subr.mxu0 0.0
    %533 = vmatpush1.msra.mxu0 0.0
    %534 = vmatprep.subr.mxu0 0.0
    %535 = vmatpush1.msra.mxu0 0.0
    %536 = vmatprep.subr.mxu0 0.0
    %537 = vmatpush1.msra.mxu0 0.0
    %538 = vmatprep.subr.mxu0 0.0
    %539 = vmatpush1.msra.mxu0 0.0
    %540 = vmatprep.mubr.f32.mxu0 0.0
    %541 = vmatmul.mubr.f32.gmra.mrb[0].mxu0 %v435
    %v542 = vpop.f32.mrb[0].mxu0
    %v543 = vadd.f32 %v474, %v542
    %v544 = vpop.f32.mrb[0].mxu0
    %545 = vmatprep.mubr.f32.mxu0 0.0
    %546 = vmatmul.mubr.f32.gmra.mrb[0].mxu0 %v436
    %v547 = vpop.f32.mrb[0].mxu0
    %v548 = vadd.f32 %v474, %v547
    %v549 = vpop.f32.mrb[0].mxu0
    %550 = vmatprep.mubr.f32.mxu0 0.0
    %551 = vmatmul.mubr.f32.gmra.mrb[0].mxu0 %v437
    %v552 = vpop.f32.mrb[0].mxu0
    %v553 = vadd.f32 %v474, %v552
    %v554 = vpop.f32.mrb[0].mxu0
    %555 = vmatprep.mubr.f32.mxu0 0.0
    %556 = vmatmul.mubr.f32.gmra.mrb[0].mxu0 %v438
    %v557 = vpop.f32.mrb[0].mxu0
    %v558 = vadd.f32 %v474, %v557
    %v559 = vpop.f32.mrb[0].mxu0
    %560 = vmatprep.mubr.f32.mxu0 0.0
    %561 = vmatmul.mubr.f32.gmra.mrb[0].mxu0 %v439
    %v562 = vpop.f32.mrb[0].mxu0
    %v563 = vadd.f32 %v474, %v562
    %v564 = vpop.f32.mrb[0].mxu0
    %565 = vmatprep.mubr.f32.mxu0 0.0
    %566 = vmatmul.mubr.f32.gmra.mrb[0].mxu0 %v440
    %v567 = vpop.f32.mrb[0].mxu0
    %v568 = vadd.f32 %v474, %v567
    %v569 = vpop.f32.mrb[0].mxu0
    %570 = vmatprep.mubr.f32.mxu0 0.0
    %571 = vmatmul.mubr.f32.gmra.mrb[0].mxu0 %v441
    %v572 = vpop.f32.mrb[0].mxu0
    %v573 = vadd.f32 %v474, %v572
    %v574 = vpop.f32.mrb[0].mxu0
    %575 = vmatprep.mubr.f32.mxu0 0.0
    %576 = vmatmul.mubr.f32.gmra.mrb[0].mxu0 %v442
    %v577 = vpop.f32.mrb[0].mxu0
    %v578 = vadd.f32 %v474, %v577
    %v579 = vpop.f32.mrb[0].mxu0
    %580 = vmatprep.mubr.f32.mxu0 0.0
    %581 = vmatmul.mubr.f32.gmra.mrb[0].mxu0 %v443
    %v582 = vpop.f32.mrb[0].mxu0
    %v583 = vadd.f32 %v474, %v582
    %v584 = vpop.f32.mrb[0].mxu0
    %585 = vmatprep.mubr.f32.mxu0 0.0
    %586 = vmatmul.mubr.f32.gmra.mrb[0].mxu0 %v444
    %v587 = vpop.f32.mrb[0].mxu0
    %v588 = vadd.f32 %v474, %v587
    %v589 = vpop.f32.mrb[0].mxu0
    %590 = vmatprep.mubr.f32.mxu0 0.0
    %591 = vmatmul.mubr.f32.gmra.mrb[0].mxu0 %v445
    %v592 = vpop.f32.mrb[0].mxu0
    %v593 = vadd.f32 %v474, %v592
    %v594 = vpop.f32.mrb[0].mxu0
    %595 = vmatprep.mubr.f32.mxu0 0.0
    %596 = vmatmul.mubr.f32.gmra.mrb[0].mxu0 %v446
    %v597 = vpop.f32.mrb[0].mxu0
    %v598 = vadd.f32 %v474, %v597
    %v599 = vpop.f32.mrb[0].mxu0
    %600 = vmatprep.mubr.f32.mxu0 0.0
    %601 = vmatmul.mubr.f32.gmra.mrb[0].mxu0 %v447
    %v602 = vpop.f32.mrb[0].mxu0
    %v603 = vadd.f32 %v474, %v602
    %v604 = vpop.f32.mrb[0].mxu0
    %605 = vmatprep.mubr.f32.mxu0 0.0
    %606 = vmatmul.mubr.f32.gmra.mrb[0].mxu0 %v448
    %v607 = vpop.f32.mrb[0].mxu0
    %v608 = vadd.f32 %v474, %v607
    %v609 = vpop.f32.mrb[0].mxu0
    %610 = vmatprep.mubr.f32.mxu0 0.0
    %611 = vmatmul.mubr.f32.gmra.mrb[0].mxu0 %v449
    %v612 = vpop.f32.mrb[0].mxu0
    %v613 = vadd.f32 %v474, %v612
    %v614 = vpop.f32.mrb[0].mxu0
    %615 = vmatprep.mubr.f32.mxu0 0.0
    %616 = vmatmul.mubr.f32.gmra.mrb[0].mxu0 %v450
    %v617 = vpop.f32.mrb[0].mxu0
    %v618 = vadd.f32 %v474, %v617
    %v619 = vpop.f32.mrb[0].mxu0
    %620 = vdwg.mxu0
    %v621 = vmax.f32 %v543, 0.0
    %v622 = vmax.f32 %v548, 0.0
    %v623 = vmax.f32 %v553, 0.0
    %v624 = vmax.f32 %v558, 0.0
    %v625 = vmax.f32 %v563, 0.0
    %v626 = vmax.f32 %v568, 0.0
    %v627 = vmax.f32 %v573, 0.0
    %v628 = vmax.f32 %v578, 0.0
    %v629 = vmax.f32 %v583, 0.0
    %v630 = vmax.f32 %v588, 0.0
    %v631 = vmax.f32 %v593, 0.0
    %v632 = vmax.f32 %v598, 0.0
    %v633 = vmax.f32 %v603, 0.0
    %v634 = vmax.f32 %v608, 0.0
    %v635 = vmax.f32 %v613, 0.0
    %v636 = vmax.f32 %v618, 0.0
    %s637 = scalar_lea.vmem [#allocation2], 384
    %v638 = vld [vmem:[%s637] sm:$0xff]
    %v639 = vld [vmem:[%s3] sm:$0xff]
    %641 = vset.pattern.permute.xlu0 0
    %642 = vperm.xlu0 %641, %v639
    %v643 = vpop.permute.xlu0 %642
    %645 = vmatprep.subr.mxu0 0.0
    %646 = vmatpush1.xpose.msra.mxu0 %v621
    %647 = vmatprep.subr.mxu0 0.0
    %648 = vmatpush1.xpose.msra.mxu0 %v622
    %649 = vmatprep.subr.mxu0 0.0
    %650 = vmatpush1.xpose.msra.mxu0 %v623
    %651 = vmatprep.subr.mxu0 0.0
    %652 = vmatpush1.xpose.msra.mxu0 %v624
    %653 = vmatprep.subr.mxu0 0.0
    %654 = vmatpush1.xpose.msra.mxu0 %v625
    %655 = vmatprep.subr.mxu0 0.0
    %656 = vmatpush1.xpose.msra.mxu0 %v626
    %657 = vmatprep.subr.mxu0 0.0
    %658 = vmatpush1.xpose.msra.mxu0 %v627
    %659 = vmatprep.subr.mxu0 0.0
    %660 = vmatpush1.xpose.msra.mxu0 %v628
    %661 = vmatprep.subr.mxu0 0.0
    %662 = vmatpush1.xpose.msra.mxu0 %v629
    %663 = vmatprep.subr.mxu0 0.0
    %664 = vmatpush1.xpose.msra.mxu0 %v630
    %665 = vmatprep.subr.mxu0 0.0
    %666 = vmatpush1.xpose.msra.mxu0 %v631
    %667 = vmatprep.subr.mxu0 0.0
    %668 = vmatpush1.xpose.msra.mxu0 %v632
    %669 = vmatprep.subr.mxu0 0.0
    %670 = vmatpush1.xpose.msra.mxu0 %v633
    %671 = vmatprep.subr.mxu0 0.0
    %672 = vmatpush1.xpose.msra.mxu0 %v634
    %673 = vmatprep.subr.mxu0 0.0
    %674 = vmatpush1.xpose.msra.mxu0 %v635
    %675 = vmatprep.subr.mxu0 0.0
    %676 = vmatpush1.xpose.msra.mxu0 %v636
    %677 = vmatprep.subr.mxu0 0.0
    %678 = vmatpush1.xpose.msra.mxu0 0.0
    %679 = vmatprep.subr.mxu0 0.0
    %680 = vmatpush1.xpose.msra.mxu0 0.0
    %681 = vmatprep.subr.mxu0 0.0
    %682 = vmatpush1.xpose.msra.mxu0 0.0
    %683 = vmatprep.subr.mxu0 0.0
    %684 = vmatpush1.xpose.msra.mxu0 0.0
    %685 = vmatprep.subr.mxu0 0.0
    %686 = vmatpush1.xpose.msra.mxu0 0.0
    %687 = vmatprep.subr.mxu0 0.0
    %688 = vmatpush1.xpose.msra.mxu0 0.0
    %689 = vmatprep.subr.mxu0 0.0
    %690 = vmatpush1.xpose.msra.mxu0 0.0
    %691 = vmatprep.subr.mxu0 0.0
    %692 = vmatpush1.xpose.msra.mxu0 0.0
    %693 = vmatprep.subr.mxu0 0.0
    %694 = vmatpush1.xpose.msra.mxu0 0.0
    %695 = vmatprep.subr.mxu0 0.0
    %696 = vmatpush1.xpose.msra.mxu0 0.0
    %697 = vmatprep.subr.mxu0 0.0
    %698 = vmatpush1.xpose.msra.mxu0 0.0
    %699 = vmatprep.subr.mxu0 0.0
    %700 = vmatpush1.xpose.msra.mxu0 0.0
    %701 = vmatprep.subr.mxu0 0.0
    %702 = vmatpush1.xpose.msra.mxu0 0.0
    %703 = vmatprep.subr.mxu0 0.0
    %704 = vmatpush1.xpose.msra.mxu0 0.0
    %705 = vmatprep.subr.mxu0 0.0
    %706 = vmatpush1.xpose.msra.mxu0 0.0
    %707 = vmatprep.subr.mxu0 0.0
    %708 = vmatpush1.xpose.msra.mxu0 0.0
    %709 = vmatprep.mubr.f32.mxu0 0.0
    %710 = vmatmul.mubr.f32.gmra.mrb[0].mxu0 %v638
    %v711 = vpop.f32.mrb[0].mxu0
    %v712 = vadd.f32 %v643, %v711
    %v713 = vpop.f32.mrb[0].mxu0
    %714 = vdwg.mxu0
    %715 = vst [vmem:[%s4] sm:$0xff] %v712
    // Predicated region
    $region22: #{simple_tetris_dqn.1} parent=1 // pred_check
      _
    $region23: #{simple_tetris_dqn.1} parent=1 // pred_check_branch
      %717 = sbr.rel (0) target = $region25
    $region24: #{simple_tetris_dqn.1} parent=1 // pred_region
      _
    $region25: #{simple_tetris_dqn.1} parent=1 // pred_fallthru
      _
    // Predicated region
    $region26: #{simple_tetris_dqn.1} parent=1 // pred_check
      _
    $region27: #{simple_tetris_dqn.1} parent=1 // pred_check_branch
      %719 = sbr.rel (0) target = $region29
    $region28: #{simple_tetris_dqn.1} parent=1 // pred_region
      _
    $region29: #{simple_tetris_dqn.1} parent=1 // pred_fallthru
      _
    %720 = vsyncpa [#allocation3], 1

</llo_original>
